<compile_context>
chip_gen: v7x
topology: tpu7x:2x2x1
jax: 0.10.0
libtpu: 0.0.40
codegen_flags: <defaults>
</compile_context>

<pallas_src>
import jax
import jax.numpy as jnp
from jax.experimental import pallas as pl
from jax.experimental.pallas import tpu as pltpu

_LANE = 128          # lane width (last dim)
_SUBLANE_ALIGN = 16  # multiple of both f32 (8) and bf16 (16) sublane tiles


def _round_up(x, m):
    return ((x + m - 1) // m) * m


# --------------------------------------------------------------------------- #
# Kernel                                                                       #
# --------------------------------------------------------------------------- #
def _mlp_heads_kernel(x_ref, w1_ref, b1_ref, w2_ref, b2_ref, wh_ref, bh_ref,
                      logits_ref):
    # MXU dots use the (possibly bf16) weight dtype with f32 accumulation;
    # all elementwise work (bias add, ReLU) stays f32 (v5e has no bf16 VPU path).
    mxu_dtype = w1_ref.dtype

    x = x_ref[...].astype(mxu_dtype)
    h = jnp.dot(x, w1_ref[...], preferred_element_type=jnp.float32)
    h = jnp.maximum(h + b1_ref[...], 0.0)

    feat = jnp.dot(h.astype(mxu_dtype), w2_ref[...],
                   preferred_element_type=jnp.float32)
    feat = feat + b2_ref[...]

    logits = jnp.dot(feat.astype(mxu_dtype), wh_ref[...],
                     preferred_element_type=jnp.float32)
    logits_ref[...] = (logits + bh_ref[...]).astype(logits_ref.dtype)


# --------------------------------------------------------------------------- #
# One-time parameter preparation (hoisted out of the per-call forward path)    #
# --------------------------------------------------------------------------- #
def prepare_params(params, *, use_bf16=True):
    """Pad the concatenated head dim to a lane multiple and (optionally) cast
    the matmul weights to bf16. Call once; reuse across forward calls."""
    w1, b1, w2, b2, wh, bh = (params["w1"], params["b1"], params["w2"],
                              params["b2"], params["wh"], params["bh"])
    h_total = wh.shape[1]
    h_pad = _round_up(h_total, _LANE)
    if h_pad != h_total:
        wh = jnp.pad(wh, ((0, 0), (0, h_pad - h_total)))
        bh = jnp.pad(bh, ((0, 0), (0, h_pad - h_total)))

    wdt = jnp.bfloat16 if use_bf16 else jnp.float32
    prepared = {
        "w1": w1.astype(wdt), "b1": b1,
        "w2": w2.astype(wdt), "b2": b2,
        "wh": wh.astype(wdt), "bh": bh,
        "h_total": h_total, "h_pad": h_pad, "use_bf16": use_bf16,
    }
    # Materialize now so casts/pads never run inside the forward path.
    jax.block_until_ready(prepared["wh"])
    return prepared


# --------------------------------------------------------------------------- #
# Batch-tile selection                                                         #
# --------------------------------------------------------------------------- #
def _choose_tile_b(B, requested=None, max_tile=2048, megacore_tiles=2):
    """Pick a batch-tile size.

    * tile is a multiple of 16 (valid sublane tiling for f32 and bf16 blocks);
    * padding waste is bounded to < 16 rows per tile (tile ~= ceil(B / n_tiles));
    * when B is large enough, at least `megacore_tiles` tiles are produced so the
      "parallel" grid axis shards across both v7x TensorCores;
    * each tile is capped at `max_tile` rows so per-step VMEM stays a few MiB.
    """
    B = max(int(B), 1)
    cap = requested if requested is not None else max_tile
    cap = max(_SUBLANE_ALIGN, int(cap))
    n_tiles = pl.cdiv(B, cap)
    if B >= 2 * _SUBLANE_ALIGN:
        n_tiles = max(n_tiles, megacore_tiles)
    return _round_up(pl.cdiv(B, n_tiles), _SUBLANE_ALIGN)


# --------------------------------------------------------------------------- #
# Forward pass                                                                 #
# --------------------------------------------------------------------------- #
def numerical_model_forward(x, prepared, num_binary, num_multiclass,
                            *, tile_b=None, max_tile=2048):
    """Fused forward pass. Returns (binary_logits, [multiclass_logits...])."""
    B, F = x.shape
    w1, b1 = prepared["w1"], prepared["b1"]
    w2, b2 = prepared["w2"], prepared["b2"]
    wh, bh = prepared["wh"], prepared["bh"]
    h_total, h_pad = prepared["h_total"], prepared["h_pad"]
    d1 = w1.shape[1]          # 512
    d2 = w2.shape[1]          # 256

    # bf16 output halves the dominant (128-lane padded) HBM writeback stream;
    # the f32 path keeps an exact f32 output for tight-tolerance checking.
    out_dtype = jnp.bfloat16 if prepared["use_bf16"] else jnp.float32

    tile = _choose_tile_b(B, tile_b, max_tile)
    n_tiles = pl.cdiv(B, tile)
    b_pad = n_tiles * tile
    if b_pad != B:
        x = jnp.pad(x, ((0, b_pad - B), (0, 0)))

    w_bytes = jnp.dtype(w1.dtype).itemsize
    x_bytes = jnp.dtype(x.dtype).itemsize
    o_bytes = jnp.dtype(out_dtype).itemsize
    cost = pl.CostEstimate(
        flops=2 * b_pad * (F * d1 + d1 * d2 + d2 * h_pad),
        transcendentals=0,
        bytes_accessed=((F * d1 + d1 * d2 + d2 * h_pad) * w_bytes
                        + (d1 + d2 + h_pad) * 4
                        + b_pad * F * x_bytes
                        + b_pad * h_pad * o_bytes),
    )

    logits = pl.pallas_call(
        _mlp_heads_kernel,
        out_shape=jax.ShapeDtypeStruct((b_pad, h_pad), out_dtype),
        grid_spec=pltpu.PrefetchScalarGridSpec(
            num_scalar_prefetch=0,
            grid=(n_tiles,),
            in_specs=[
                pl.BlockSpec((tile, F), lambda i: (i, 0)),    # x tile (pipelined)
                pl.BlockSpec((F, d1), lambda i: (0, 0)),      # W1 (VMEM-resident)
                pl.BlockSpec((1, d1), lambda i: (0, 0)),      # b1
                pl.BlockSpec((d1, d2), lambda i: (0, 0)),     # W2
                pl.BlockSpec((1, d2), lambda i: (0, 0)),      # b2
                pl.BlockSpec((d2, h_pad), lambda i: (0, 0)),  # Wh (all heads)
                pl.BlockSpec((1, h_pad), lambda i: (0, 0)),   # bh
            ],
            out_specs=pl.BlockSpec((tile, h_pad), lambda i: (i, 0)),
        ),
        compiler_params=pltpu.CompilerParams(
            dimension_semantics=("parallel",),   # shards batch tiles across TCs on v7x
            # Headroom for large tiles (tile_b up to 2048 needs ~11 MiB/step);
            # 48 MiB is below v7x's 64 MiB physical VMEM and v5e/v6e's 128 MiB.
            vmem_limit_bytes=48 * 1024 * 1024,
        ),
        cost_estimate=cost,
    )(x, w1, b1, w2, b2, wh, bh)

    logits = logits[:B, :h_total].astype(jnp.float32)
    binary_logits = logits[:, :num_binary]
    multiclass_logits = []
    off = num_binary
    for n in num_multiclass:
        multiclass_logits.append(logits[:, off:off + n])
        off += n
    return binary_logits, multiclass_logits


# --------------------------------------------------------------------------- #
# Parameter init / reference / checking                                        #
# --------------------------------------------------------------------------- #
def init_params(key, num_numerical_features, num_binary, num_multiclass):
    """Deterministic parameter init matching the PyTorch module's shapes."""
    keys = jax.random.split(key, 6 + 2 * len(num_multiclass))

    def lin(kw, kb, fan_in, fan_out):
        bound = 1.0 / jnp.sqrt(jnp.float32(fan_in))
        w = jax.random.uniform(kw, (fan_in, fan_out), jnp.float32, -bound, bound)
        b = jax.random.uniform(kb, (1, fan_out), jnp.float32, -bound, bound)
        return w, b

    w1, b1 = lin(keys[0], keys[1], num_numerical_features, 512)
    w2, b2 = lin(keys[2], keys[3], 512, 256)
    wb, bb = lin(keys[4], keys[5], 256, num_binary)

    head_ws, head_bs = [wb], [bb]
    for i, n in enumerate(num_multiclass):
        w, b = lin(keys[6 + 2 * i], keys[7 + 2 * i], 256, n)
        head_ws.append(w)
        head_bs.append(b)

    wh = jnp.concatenate(head_ws, axis=1)  # (256, num_binary + sum(num_multiclass))
    bh = jnp.concatenate(head_bs, axis=1)
    return {"w1": w1, "b1": b1, "w2": w2, "b2": b2, "wh": wh, "bh": bh}


def reference_forward(x, params, num_binary, num_multiclass):
    """Pure-JAX f32 reference for correctness checking."""
    h = jnp.maximum(x @ params["w1"] + params["b1"], 0.0)
    feat = h @ params["w2"] + params["b2"]
    logits = feat @ params["wh"] + params["bh"]
    binary = logits[:, :num_binary]
    mc, off = [], num_binary
    for n in num_multiclass:
        mc.append(logits[:, off:off + n])
        off += n
    return binary, mc


def _check(got, ref, num_binary, num_multiclass, B, atol, rtol):
    gb, gm = got
    rb, rm = ref
    assert gb.shape == (B, num_binary)
    assert jnp.allclose(gb, rb, atol=atol, rtol=rtol), "binary head mismatch"
    for g, r, n in zip(gm, rm, num_multiclass):
        assert g.shape == (B, n)
        assert jnp.allclose(g, r, atol=atol, rtol=rtol), "multiclass head mismatch"


if __name__ == "__main__":
    num_numerical_features = 32
    num_binary = 4
    num_multiclass = [3, 5]

    key = jax.random.PRNGKey(0)
    kx, kp, kx2 = jax.random.split(key, 3)
    params = init_params(kp, num_numerical_features, num_binary, num_multiclass)

    # One-time weight cast / head-dim pad (hoisted out of the per-call path).
    prep_f32 = prepare_params(params, use_bf16=False)
    prep_bf16 = prepare_params(params, use_bf16=True)

    # ---- small batch (B=8): exact f32 path + fast bf16 path ----
    B = 8
    x = jax.random.normal(kx, (B, num_numerical_features), jnp.float32)
    ref = reference_forward(x, params, num_binary, num_multiclass)

    out_f32 = numerical_model_forward(x, prep_f32, num_binary, num_multiclass)
    jax.block_until_ready(out_f32[0])
    _check(out_f32, ref, num_binary, num_multiclass, B, atol=1e-4, rtol=1e-4)

    out_bf16 = numerical_model_forward(x, prep_bf16, num_binary, num_multiclass)
    jax.block_until_ready(out_bf16[0])
    _check(out_bf16, ref, num_binary, num_multiclass, B, atol=6e-2, rtol=6e-2)

    # ---- ragged larger batch (B=260): auto tile -> 2 tiles of 144 rows
    #      (padding bounded to <16 rows/tile, megacore-friendly >=2-tile grid) ----
    B2 = 260
    x2 = jax.random.normal(kx2, (B2, num_numerical_features), jnp.float32)
    ref2 = reference_forward(x2, params, num_binary, num_multiclass)
    out2 = numerical_model_forward(x2, prep_bf16, num_binary, num_multiclass)
    jax.block_until_ready(out2[0])
    _check(out2, ref2, num_binary, num_multiclass, B2, atol=6e-2, rtol=6e-2)

    # ---- explicit tile cap (exercises >2 grid steps: 3 tiles of 96 rows) ----
    out3 = numerical_model_forward(x2, prep_bf16, num_binary, num_multiclass,
                                   tile_b=96)
    jax.block_until_ready(out3[0])
    _check(out3, ref2, num_binary, num_multiclass, B2, atol=6e-2, rtol=6e-2)

    print("KERNEL_OK")
</pallas_src>

<mosaic_0001>
module attributes {stable_mosaic.version = 11 : i64} {
  func.func @_mlp_heads_kernel(%arg0: i32, %arg1: memref<16x32xf32, #tpu.memory_space<vmem>>, %arg2: memref<32x512xf32, #tpu.memory_space<vmem>>, %arg3: memref<1x512xf32, #tpu.memory_space<vmem>>, %arg4: memref<512x256xf32, #tpu.memory_space<vmem>>, %arg5: memref<1x256xf32, #tpu.memory_space<vmem>>, %arg6: memref<256x128xf32, #tpu.memory_space<vmem>>, %arg7: memref<1x128xf32, #tpu.memory_space<vmem>>, %arg8: memref<16x128xf32, #tpu.memory_space<vmem>>) attributes {dimension_semantics = [#tpu.dimension_semantics<parallel>], iteration_bounds = array<i64: 1>, scalar_prefetch = 0 : i64, scratch_operands = 0 : i64, tpu.core_type = #tpu.core_type<tc>, window_params = [{transform_indices = @transform_0, window_bounds = array<i64: 16, 32>}, {pipeline_mode = #tpu.pipeline_mode<synchronous>, transform_indices = @transform_1, window_bounds = array<i64: 32, 512>}, {pipeline_mode = #tpu.pipeline_mode<synchronous>, transform_indices = @transform_2, window_bounds = array<i64: 1, 512>}, {pipeline_mode = #tpu.pipeline_mode<synchronous>, transform_indices = @transform_3, window_bounds = array<i64: 512, 256>}, {pipeline_mode = #tpu.pipeline_mode<synchronous>, transform_indices = @transform_4, window_bounds = array<i64: 1, 256>}, {pipeline_mode = #tpu.pipeline_mode<synchronous>, transform_indices = @transform_5, window_bounds = array<i64: 256, 128>}, {pipeline_mode = #tpu.pipeline_mode<synchronous>, transform_indices = @transform_6, window_bounds = array<i64: 1, 128>}, {transform_indices = @transform_7, window_bounds = array<i64: 16, 128>}]} {
    %c0 = arith.constant 0 : index
    %c0_0 = arith.constant 0 : index
    %0 = vector.load %arg1[%c0, %c0_0] : memref<16x32xf32, #tpu.memory_space<vmem>>, vector<16x32xf32>
    %c0_1 = arith.constant 0 : index
    %c0_2 = arith.constant 0 : index
    %1 = vector.load %arg2[%c0_1, %c0_2] : memref<32x512xf32, #tpu.memory_space<vmem>>, vector<32x512xf32>
    %cst = arith.constant dense<0.000000e+00> : vector<16x512xf32>
    %2 = tpu.matmul %0, %1, %cst {dimension_numbers = #tpu.dot_dimension_numbers<[1], [0], [0], [1], [0, 0, 1, 1], [], []>} : vector<16x32xf32>, vector<32x512xf32>, vector<16x512xf32> -> vector<16x512xf32>
    %c0_3 = arith.constant 0 : index
    %c0_4 = arith.constant 0 : index
    %3 = vector.load %arg3[%c0_3, %c0_4] : memref<1x512xf32, #tpu.memory_space<vmem>>, vector<1x512xf32>
    %4 = vector.broadcast %3 : vector<1x512xf32> to vector<16x512xf32>
    %5 = arith.addf %2, %4 : vector<16x512xf32>
    %cst_5 = arith.constant 0.000000e+00 : f32
    %6 = vector.broadcast %cst_5 : f32 to vector<16x512xf32>
    %7 = arith.maximumf %5, %6 : vector<16x512xf32>
    %c0_6 = arith.constant 0 : index
    %c0_7 = arith.constant 0 : index
    %8 = vector.load %arg4[%c0_6, %c0_7] : memref<512x256xf32, #tpu.memory_space<vmem>>, vector<512x256xf32>
    %cst_8 = arith.constant dense<0.000000e+00> : vector<16x256xf32>
    %9 = tpu.matmul %7, %8, %cst_8 {dimension_numbers = #tpu.dot_dimension_numbers<[1], [0], [0], [1], [0, 0, 1, 1], [], []>} : vector<16x512xf32>, vector<512x256xf32>, vector<16x256xf32> -> vector<16x256xf32>
    %c0_9 = arith.constant 0 : index
    %c0_10 = arith.constant 0 : index
    %10 = vector.load %arg5[%c0_9, %c0_10] : memref<1x256xf32, #tpu.memory_space<vmem>>, vector<1x256xf32>
    %11 = vector.broadcast %10 : vector<1x256xf32> to vector<16x256xf32>
    %12 = arith.addf %9, %11 : vector<16x256xf32>
    %c0_11 = arith.constant 0 : index
    %c0_12 = arith.constant 0 : index
    %13 = vector.load %arg6[%c0_11, %c0_12] : memref<256x128xf32, #tpu.memory_space<vmem>>, vector<256x128xf32>
    %cst_13 = arith.constant dense<0.000000e+00> : vector<16x128xf32>
    %14 = tpu.matmul %12, %13, %cst_13 {dimension_numbers = #tpu.dot_dimension_numbers<[1], [0], [0], [1], [0, 0, 1, 1], [], []>} : vector<16x256xf32>, vector<256x128xf32>, vector<16x128xf32> -> vector<16x128xf32>
    %c0_14 = arith.constant 0 : index
    %c0_15 = arith.constant 0 : index
    %15 = vector.load %arg7[%c0_14, %c0_15] : memref<1x128xf32, #tpu.memory_space<vmem>>, vector<1x128xf32>
    %16 = vector.broadcast %15 : vector<1x128xf32> to vector<16x128xf32>
    %17 = arith.addf %14, %16 : vector<16x128xf32>
    %c0_16 = arith.constant 0 : index
    %c0_17 = arith.constant 0 : index
    %18 = vector.load %arg8[%c0_16, %c0_17] : memref<16x128xf32, #tpu.memory_space<vmem>>, vector<16x128xf32>
    tpu.vector_store %arg8[%c0_16, %c0_17], %17 {strides = array<i32>} : memref<16x128xf32, #tpu.memory_space<vmem>>, vector<16x128xf32>,
    return
  }
  func.func @transform_0(%arg0: i32) -> (i32, i32) {
    %c0_i32 = arith.constant 0 : i32
    %c0_i32_0 = arith.constant 0 : i32
    return %arg0, %c0_i32 : i32, i32
  }
  func.func @transform_1(%arg0: i32) -> (i32, i32) {
    %c0_i32 = arith.constant 0 : i32
    %c0_i32_0 = arith.constant 0 : i32
    %c0_i32_1 = arith.constant 0 : i32
    return %c0_i32, %c0_i32_0 : i32, i32
  }
  func.func @transform_2(%arg0: i32) -> (i32, i32) {
    %c0_i32 = arith.constant 0 : i32
    %c0_i32_0 = arith.constant 0 : i32
    %c0_i32_1 = arith.constant 0 : i32
    return %c0_i32, %c0_i32_0 : i32, i32
  }
  func.func @transform_3(%arg0: i32) -> (i32, i32) {
    %c0_i32 = arith.constant 0 : i32
    %c0_i32_0 = arith.constant 0 : i32
    %c0_i32_1 = arith.constant 0 : i32
    return %c0_i32, %c0_i32_0 : i32, i32
  }
  func.func @transform_4(%arg0: i32) -> (i32, i32) {
    %c0_i32 = arith.constant 0 : i32
    %c0_i32_0 = arith.constant 0 : i32
    %c0_i32_1 = arith.constant 0 : i32
    return %c0_i32, %c0_i32_0 : i32, i32
  }
  func.func @transform_5(%arg0: i32) -> (i32, i32) {
    %c0_i32 = arith.constant 0 : i32
    %c0_i32_0 = arith.constant 0 : i32
    %c0_i32_1 = arith.constant 0 : i32
    return %c0_i32, %c0_i32_0 : i32, i32
  }
  func.func @transform_6(%arg0: i32) -> (i32, i32) {
    %c0_i32 = arith.constant 0 : i32
    %c0_i32_0 = arith.constant 0 : i32
    %c0_i32_1 = arith.constant 0 : i32
    return %c0_i32, %c0_i32_0 : i32, i32
  }
  func.func @transform_7(%arg0: i32) -> (i32, i32) {
    %c0_i32 = arith.constant 0 : i32
    %c0_i32_0 = arith.constant 0 : i32
    return %arg0, %c0_i32 : i32, i32
  }
}

</mosaic_0001>

<llo_original>
// kernel: tpu_custom_call.1
$region0: #{tpu_custom_call.1}
  #allocation0 [shape = 'u32[]', space=smem, size = 0x4, offset = 0x4, fixed_abs, tag = 'smem constant byte address 0x4 - core index']
  #allocation1 [shape = 'u32[144,128]{1,0:T(1,128)}', space=vmem, size = 0x12000, scoped, tag = 'internal scratch']
  %s0 = inlined_call_operand.hbm [shape: f32[16,32], index: 0, kind: input, shape index: {}]
  %s1 = inlined_call_operand.hbm [shape: f32[32,512], index: 1, kind: input, shape index: {}]
  %s2 = inlined_call_operand.vmem [shape: f32[1,512], index: 2, kind: input, shape index: {}]
  %s3 = inlined_call_operand.hbm [shape: f32[512,256], index: 3, kind: input, shape index: {}]
  %s4 = inlined_call_operand.vmem [shape: f32[1,256], index: 4, kind: input, shape index: {}]
  %s5 = inlined_call_operand.hbm [shape: f32[256,128], index: 5, kind: input, shape index: {}]
  %s6 = inlined_call_operand.vmem [shape: f32[1,128], index: 6, kind: input, shape index: {}]
  %s7 = inlined_call_operand.hbm [shape: f32[16,128], index: 7, kind: output, shape index: {}]
  %s8 = sld [smem:[#allocation0]]
  $region54: #{tpu_custom_call.1} parent=0
    _
  %s10 = ssub.s32 1, %s8
  %s11 = scalar_select 0, %s10, %s8
  $region1: #{tpu_custom_call.1} parent=0
    #allocation2 [shape = 'u8[8192]{0}', space=vmem, size = 0x2000, scoped, tag = 'input window, operand 0, single buffered']
    #allocation3 [shape = 's32[1]{0}', space=sflag, size = 0x4, scoped, tag = 'scoped memory for tpu_custom_call.1']
    #allocation4 [shape = 's32[1]{0}', space=sflag, size = 0x4, scoped, tag = 'scoped memory for tpu_custom_call.1']
    #allocation5 [shape = 'u8[65536]{0}', space=vmem, size = 0x10000, scoped, tag = 'input window, operand 1, single buffered']
    #allocation6 [shape = 's32[1]{0}', space=sflag, size = 0x4, scoped, tag = 'scoped memory for tpu_custom_call.1']
    #allocation7 [shape = 'u8[524288]{0}', space=vmem, size = 0x80000, scoped, tag = 'input window, operand 3, single buffered']
    #allocation8 [shape = 'u8[131072]{0}', space=vmem, size = 0x20000, scoped, tag = 'input window, operand 5, single buffered']
    #allocation9 [shape = 's32[1]{0}', space=sflag, size = 0x4, scoped, tag = 'scoped memory for tpu_custom_call.1']
    #allocation10 [shape = 'u8[8192]{0}', space=vmem, size = 0x2000, scoped, tag = 'output window, operand 0, single buffered']
    %12 = vsyncpa [#allocation3], 0
    %13 = vsyncpa [#allocation6], 0
    %14 = vsyncpa [#allocation9], 0
    %15 = vsyncpa [#allocation4], 0
    // Predicated region
    $region2: #{tpu_custom_call.1} parent=1 // pred_check
      _
    $region3: #{tpu_custom_call.1} parent=1 // pred_check_branch
      %17 = sbr.rel (0) target = $region5
    $region4: #{tpu_custom_call.1} parent=1 // pred_region
      %s19 = ssub.s32 256, 256
      %20 = vsyncadd [#allocation3], %s19
      %s21 = sshll.u32 [#allocation2], 4
      %s22 = int_to_ptr.vmem [resolvable:$true] %s21
      %27 = dma.hbm_to_vmem [thread:$0]  %s0, 256, %s22, [#allocation3], 128, 128, 8
    $region5: #{tpu_custom_call.1} parent=1 // pred_fallthru
      _
    // Predicated region
    $region6: #{tpu_custom_call.1} parent=1 // pred_check
      _
    $region7: #{tpu_custom_call.1} parent=1 // pred_check_branch
      %29 = sbr.rel (0) target = $region9
    $region8: #{tpu_custom_call.1} parent=1 // pred_region
      %s31 = ssub.s32 2048, 2048
      %32 = vsyncadd [#allocation6], %s31
      %s33 = sshll.u32 [#allocation5], 4
      %s34 = int_to_ptr.vmem [resolvable:$true] %s33
      %39 = dma.hbm_to_vmem [thread:$0]  %s1, 2048, %s34, [#allocation6], 512, 512, 32
    $region9: #{tpu_custom_call.1} parent=1 // pred_fallthru
      _
    // Predicated region
    $region10: #{tpu_custom_call.1} parent=1 // pred_check
      _
    $region11: #{tpu_custom_call.1} parent=1 // pred_check_branch
      %41 = sbr.rel (0) target = $region13
    $region12: #{tpu_custom_call.1} parent=1 // pred_region
      _
    $region13: #{tpu_custom_call.1} parent=1 // pred_fallthru
      _
    // Predicated region
    $region14: #{tpu_custom_call.1} parent=1 // pred_check
      _
    $region15: #{tpu_custom_call.1} parent=1 // pred_check_branch
      %43 = sbr.rel (0) target = $region17
    $region16: #{tpu_custom_call.1} parent=1 // pred_region
      %s45 = ssub.s32 16384, 16384
      %46 = vsyncadd [#allocation6], %s45
      %s47 = sshll.u32 [#allocation7], 4
      %s48 = int_to_ptr.vmem [resolvable:$true] %s47
      %53 = dma.hbm_to_vmem [thread:$0]  %s3, 16384, %s48, [#allocation6], 256, 256, 16
    $region17: #{tpu_custom_call.1} parent=1 // pred_fallthru
      _
    // Predicated region
    $region18: #{tpu_custom_call.1} parent=1 // pred_check
      _
    $region19: #{tpu_custom_call.1} parent=1 // pred_check_branch
      %55 = sbr.rel (0) target = $region21
    $region20: #{tpu_custom_call.1} parent=1 // pred_region
      _
    $region21: #{tpu_custom_call.1} parent=1 // pred_fallthru
      _
    // Predicated region
    $region22: #{tpu_custom_call.1} parent=1 // pred_check
      _
    $region23: #{tpu_custom_call.1} parent=1 // pred_check_branch
      %57 = sbr.rel (0) target = $region25
    $region24: #{tpu_custom_call.1} parent=1 // pred_region
      %s59 = ssub.s32 4096, 4096
      %60 = vsyncadd [#allocation9], %s59
      %s61 = sshll.u32 [#allocation8], 4
      %s62 = int_to_ptr.vmem [resolvable:$true] %s61
      %67 = dma.hbm_to_vmem [thread:$0]  %s5, 4096, %s62, [#allocation9], 128, 128, 8
    $region25: #{tpu_custom_call.1} parent=1 // pred_fallthru
      _
    // Predicated region
    $region26: #{tpu_custom_call.1} parent=1 // pred_check
      _
    $region27: #{tpu_custom_call.1} parent=1 // pred_check_branch
      %69 = sbr.rel (0) target = $region29
    $region28: #{tpu_custom_call.1} parent=1 // pred_region
      _
    $region29: #{tpu_custom_call.1} parent=1 // pred_fallthru
      _
    // Predicated region
    $region30: #{tpu_custom_call.1} parent=1 // pred_check
      _
    $region31: #{tpu_custom_call.1} parent=1 // pred_check_branch
      %71 = sbr.rel (0) target = $region33
    $region32: #{tpu_custom_call.1} parent=1 // pred_region
      %72 = dma.done [#allocation3], 256
    $region33: #{tpu_custom_call.1} parent=1 // pred_fallthru
      _
    // Predicated region
    $region34: #{tpu_custom_call.1} parent=1 // pred_check
      _
    $region35: #{tpu_custom_call.1} parent=1 // pred_check_branch
      %74 = sbr.rel (0) target = $region37
    $region36: #{tpu_custom_call.1} parent=1 // pred_region
      %75 = dma.done [#allocation6], 2048
    $region37: #{tpu_custom_call.1} parent=1 // pred_fallthru
      _
    // Predicated region
    $region38: #{tpu_custom_call.1} parent=1 // pred_check
      _
    $region39: #{tpu_custom_call.1} parent=1 // pred_check_branch
      %77 = sbr.rel (0) target = $region41
    $region40: #{tpu_custom_call.1} parent=1 // pred_region
      %78 = dma.done [#allocation6], 16384
    $region41: #{tpu_custom_call.1} parent=1 // pred_fallthru
      _
    // Predicated region
    $region42: #{tpu_custom_call.1} parent=1 // pred_check
      _
    $region43: #{tpu_custom_call.1} parent=1 // pred_check_branch
      %80 = sbr.rel (0) target = $region45
    $region44: #{tpu_custom_call.1} parent=1 // pred_region
      %81 = dma.done [#allocation9], 4096
    $region45: #{tpu_custom_call.1} parent=1 // pred_fallthru
      _
    %v82 = vld [vmem:[#allocation2] sm:$0xff]
    %v83 = vld [vmem:[#allocation2 + $0x8] sm:$0xff]
    %v84 = vld [vmem:[#allocation5] sm:$0xff]
    %v85 = vld [vmem:[#allocation5 + $0x8] sm:$0xff]
    %v86 = vld [vmem:[#allocation5 + $0x10] sm:$0xff]
    %v87 = vld [vmem:[#allocation5 + $0x18] sm:$0xff]
    %v88 = vld [vmem:[#allocation5 + $0x20] sm:$0xff]
    %v89 = vld [vmem:[#allocation5 + $0x28] sm:$0xff]
    %v90 = vld [vmem:[#allocation5 + $0x30] sm:$0xff]
    %v91 = vld [vmem:[#allocation5 + $0x38] sm:$0xff]
    %v92 = vld [vmem:[#allocation5 + $0x40] sm:$0xff]
    %v93 = vld [vmem:[#allocation5 + $0x48] sm:$0xff]
    %v94 = vld [vmem:[#allocation5 + $0x50] sm:$0xff]
    %v95 = vld [vmem:[#allocation5 + $0x58] sm:$0xff]
    %v96 = vld [vmem:[#allocation5 + $0x60] sm:$0xff]
    %v97 = vld [vmem:[#allocation5 + $0x68] sm:$0xff]
    %v98 = vld [vmem:[#allocation5 + $0x70] sm:$0xff]
    %v99 = vld [vmem:[#allocation5 + $0x78] sm:$0xff]
    %v100 = vld [vmem:[%s2] sm:$0xf]
    %v102 = vlaneseq
    %v103 = vshrl.u32 %v102, 7
    %v104 = vsub.s32 0, %v103
    %v105 = vrot.slane %v100, %v104
    %v106 = vlaneseq
    %v107 = vshrl.u32 %v106, 7
    %v108 = vsub.s32 1, %v107
    %v109 = vrot.slane %v100, %v108
    %v110 = vlaneseq
    %v111 = vshrl.u32 %v110, 7
    %v112 = vsub.s32 2, %v111
    %v113 = vrot.slane %v100, %v112
    %v114 = vlaneseq
    %v115 = vshrl.u32 %v114, 7
    %v116 = vsub.s32 3, %v115
    %v117 = vrot.slane %v100, %v116
    %vm122 = vcmask 261120
    %v124 = vsel %vm122, %v82, 0
    %v127 = vsel %vm122, %v83, 0
    %129 = vmatprep.subr.mxu0 %v85
    %130 = vmatpush1.msra.mxu0 %v84
    %131 = vmatprep.subr.mxu0 %v89
    %132 = vmatpush1.msra.mxu0 %v88
    %133 = vmatprep.subr.mxu0 %v93
    %134 = vmatpush1.msra.mxu0 %v92
    %135 = vmatprep.subr.mxu0 %v97
    %136 = vmatpush1.msra.mxu0 %v96
    %137 = vmatprep.subr.mxu0 0.0
    %138 = vmatpush1.msra.mxu0 0.0
    %139 = vmatprep.subr.mxu0 0.0
    %140 = vmatpush1.msra.mxu0 0.0
    %141 = vmatprep.subr.mxu0 0.0
    %142 = vmatpush1.msra.mxu0 0.0
    %143 = vmatprep.subr.mxu0 0.0
    %144 = vmatpush1.msra.mxu0 0.0
    %145 = vmatprep.subr.mxu0 0.0
    %146 = vmatpush1.msra.mxu0 0.0
    %147 = vmatprep.subr.mxu0 0.0
    %148 = vmatpush1.msra.mxu0 0.0
    %149 = vmatprep.subr.mxu0 0.0
    %150 = vmatpush1.msra.mxu0 0.0
    %151 = vmatprep.subr.mxu0 0.0
    %152 = vmatpush1.msra.mxu0 0.0
    %153 = vmatprep.subr.mxu0 0.0
    %154 = vmatpush1.msra.mxu0 0.0
    %155 = vmatprep.subr.mxu0 0.0
    %156 = vmatpush1.msra.mxu0 0.0
    %157 = vmatprep.subr.mxu0 0.0
    %158 = vmatpush1.msra.mxu0 0.0
    %159 = vmatprep.subr.mxu0 0.0
    %160 = vmatpush1.msra.mxu0 0.0
    %161 = vmatprep.subr.mxu0 0.0
    %162 = vmatpush1.msra.mxu0 0.0
    %163 = vmatprep.subr.mxu0 0.0
    %164 = vmatpush1.msra.mxu0 0.0
    %165 = vmatprep.subr.mxu0 0.0
    %166 = vmatpush1.msra.mxu0 0.0
    %167 = vmatprep.subr.mxu0 0.0
    %168 = vmatpush1.msra.mxu0 0.0
    %169 = vmatprep.subr.mxu0 0.0
    %170 = vmatpush1.msra.mxu0 0.0
    %171 = vmatprep.subr.mxu0 0.0
    %172 = vmatpush1.msra.mxu0 0.0
    %173 = vmatprep.subr.mxu0 0.0
    %174 = vmatpush1.msra.mxu0 0.0
    %175 = vmatprep.subr.mxu0 0.0
    %176 = vmatpush1.msra.mxu0 0.0
    %177 = vmatprep.subr.mxu0 0.0
    %178 = vmatpush1.msra.mxu0 0.0
    %179 = vmatprep.subr.mxu0 0.0
    %180 = vmatpush1.msra.mxu0 0.0
    %181 = vmatprep.subr.mxu0 0.0
    %182 = vmatpush1.msra.mxu0 0.0
    %183 = vmatprep.subr.mxu0 0.0
    %184 = vmatpush1.msra.mxu0 0.0
    %185 = vmatprep.subr.mxu0 0.0
    %186 = vmatpush1.msra.mxu0 0.0
    %187 = vmatprep.subr.mxu0 0.0
    %188 = vmatpush1.msra.mxu0 0.0
    %189 = vmatprep.subr.mxu0 0.0
    %190 = vmatpush1.msra.mxu0 0.0
    %191 = vmatprep.subr.mxu0 0.0
    %192 = vmatpush1.msra.mxu0 0.0
    %193 = vmatprep.mubr.f32.mxu0 0.0
    %194 = vmatmul.mubr.f32.gmra.mrb[0].mxu0 %v124
    %v195 = vpop.f32.mrb[0].mxu0
    %v196 = vadd.f32 %v105, %v195
    %v197 = vpop.f32.mrb[0].mxu0
    %v198 = vadd.f32 %v109, %v197
    %199 = vmatprep.mubr.f32.mxu0 0.0
    %200 = vmatmul.mubr.f32.gmra.mrb[0].mxu0 %v127
    %v201 = vpop.f32.mrb[0].mxu0
    %v202 = vadd.f32 %v105, %v201
    %v203 = vpop.f32.mrb[0].mxu0
    %v204 = vadd.f32 %v109, %v203
    %205 = vdwg.mxu0
    %206 = vmatprep.subr.mxu0 %v87
    %207 = vmatpush1.msra.mxu0 %v86
    %208 = vmatprep.subr.mxu0 %v91
    %209 = vmatpush1.msra.mxu0 %v90
    %210 = vmatprep.subr.mxu0 %v95
    %211 = vmatpush1.msra.mxu0 %v94
    %212 = vmatprep.subr.mxu0 %v99
    %213 = vmatpush1.msra.mxu0 %v98
    %214 = vmatprep.subr.mxu0 0.0
    %215 = vmatpush1.msra.mxu0 0.0
    %216 = vmatprep.subr.mxu0 0.0
    %217 = vmatpush1.msra.mxu0 0.0
    %218 = vmatprep.subr.mxu0 0.0
    %219 = vmatpush1.msra.mxu0 0.0
    %220 = vmatprep.subr.mxu0 0.0
    %221 = vmatpush1.msra.mxu0 0.0
    %222 = vmatprep.subr.mxu0 0.0
    %223 = vmatpush1.msra.mxu0 0.0
    %224 = vmatprep.subr.mxu0 0.0
    %225 = vmatpush1.msra.mxu0 0.0
    %226 = vmatprep.subr.mxu0 0.0
    %227 = vmatpush1.msra.mxu0 0.0
    %228 = vmatprep.subr.mxu0 0.0
    %229 = vmatpush1.msra.mxu0 0.0
    %230 = vmatprep.subr.mxu0 0.0
    %231 = vmatpush1.msra.mxu0 0.0
    %232 = vmatprep.subr.mxu0 0.0
    %233 = vmatpush1.msra.mxu0 0.0
    %234 = vmatprep.subr.mxu0 0.0
    %235 = vmatpush1.msra.mxu0 0.0
    %236 = vmatprep.subr.mxu0 0.0
    %237 = vmatpush1.msra.mxu0 0.0
    %238 = vmatprep.subr.mxu0 0.0
    %239 = vmatpush1.msra.mxu0 0.0
    %240 = vmatprep.subr.mxu0 0.0
    %241 = vmatpush1.msra.mxu0 0.0
    %242 = vmatprep.subr.mxu0 0.0
    %243 = vmatpush1.msra.mxu0 0.0
    %244 = vmatprep.subr.mxu0 0.0
    %245 = vmatpush1.msra.mxu0 0.0
    %246 = vmatprep.subr.mxu0 0.0
    %247 = vmatpush1.msra.mxu0 0.0
    %248 = vmatprep.subr.mxu0 0.0
    %249 = vmatpush1.msra.mxu0 0.0
    %250 = vmatprep.subr.mxu0 0.0
    %251 = vmatpush1.msra.mxu0 0.0
    %252 = vmatprep.subr.mxu0 0.0
    %253 = vmatpush1.msra.mxu0 0.0
    %254 = vmatprep.subr.mxu0 0.0
    %255 = vmatpush1.msra.mxu0 0.0
    %256 = vmatprep.subr.mxu0 0.0
    %257 = vmatpush1.msra.mxu0 0.0
    %258 = vmatprep.subr.mxu0 0.0
    %259 = vmatpush1.msra.mxu0 0.0
    %260 = vmatprep.subr.mxu0 0.0
    %261 = vmatpush1.msra.mxu0 0.0
    %262 = vmatprep.subr.mxu0 0.0
    %263 = vmatpush1.msra.mxu0 0.0
    %264 = vmatprep.subr.mxu0 0.0
    %265 = vmatpush1.msra.mxu0 0.0
    %266 = vmatprep.subr.mxu0 0.0
    %267 = vmatpush1.msra.mxu0 0.0
    %268 = vmatprep.subr.mxu0 0.0
    %269 = vmatpush1.msra.mxu0 0.0
    %270 = vmatprep.mubr.f32.mxu0 0.0
    %271 = vmatmul.mubr.f32.gmra.mrb[0].mxu0 %v124
    %v272 = vpop.f32.mrb[0].mxu0
    %v273 = vadd.f32 %v113, %v272
    %v274 = vpop.f32.mrb[0].mxu0
    %v275 = vadd.f32 %v117, %v274
    %276 = vmatprep.mubr.f32.mxu0 0.0
    %277 = vmatmul.mubr.f32.gmra.mrb[0].mxu0 %v127
    %v278 = vpop.f32.mrb[0].mxu0
    %v279 = vadd.f32 %v113, %v278
    %v280 = vpop.f32.mrb[0].mxu0
    %v281 = vadd.f32 %v117, %v280
    %282 = vdwg.mxu0
    %v283 = vmax.f32 %v196, 0.0
    %v284 = vmax.f32 %v198, 0.0
    %v285 = vmax.f32 %v273, 0.0
    %v286 = vmax.f32 %v275, 0.0
    %v287 = vmax.f32 %v202, 0.0
    %v288 = vmax.f32 %v204, 0.0
    %v289 = vmax.f32 %v279, 0.0
    %v290 = vmax.f32 %v281, 0.0
    %v291 = vld [vmem:[#allocation7] sm:$0xff]
    %v292 = vld [vmem:[#allocation7 + $0x8] sm:$0xff]
    %v293 = vld [vmem:[#allocation7 + $0x10] sm:$0xff]
    %v294 = vld [vmem:[#allocation7 + $0x18] sm:$0xff]
    %v295 = vld [vmem:[#allocation7 + $0x20] sm:$0xff]
    %v296 = vld [vmem:[#allocation7 + $0x28] sm:$0xff]
    %v297 = vld [vmem:[#allocation7 + $0x30] sm:$0xff]
    %v298 = vld [vmem:[#allocation7 + $0x38] sm:$0xff]
    %v299 = vld [vmem:[#allocation7 + $0x40] sm:$0xff]
    %v300 = vld [vmem:[#allocation7 + $0x48] sm:$0xff]
    %v301 = vld [vmem:[#allocation7 + $0x50] sm:$0xff]
    %v302 = vld [vmem:[#allocation7 + $0x58] sm:$0xff]
    %v303 = vld [vmem:[#allocation7 + $0x60] sm:$0xff]
    %v304 = vld [vmem:[#allocation7 + $0x68] sm:$0xff]
    %v305 = vld [vmem:[#allocation7 + $0x70] sm:$0xff]
    %v306 = vld [vmem:[#allocation7 + $0x78] sm:$0xff]
    %v307 = vld [vmem:[#allocation7 + $0x80] sm:$0xff]
    %v308 = vld [vmem:[#allocation7 + $0x88] sm:$0xff]
    %v309 = vld [vmem:[#allocation7 + $0x90] sm:$0xff]
    %v310 = vld [vmem:[#allocation7 + $0x98] sm:$0xff]
    %v311 = vld [vmem:[#allocation7 + $0xa0] sm:$0xff]
    %v312 = vld [vmem:[#allocation7 + $0xa8] sm:$0xff]
    %v313 = vld [vmem:[#allocation7 + $0xb0] sm:$0xff]
    %v314 = vld [vmem:[#allocation7 + $0xb8] sm:$0xff]
    %v315 = vld [vmem:[#allocation7 + $0xc0] sm:$0xff]
    %v316 = vld [vmem:[#allocation7 + $0xc8] sm:$0xff]
    %v317 = vld [vmem:[#allocation7 + $0xd0] sm:$0xff]
    %v318 = vld [vmem:[#allocation7 + $0xd8] sm:$0xff]
    %v319 = vld [vmem:[#allocation7 + $0xe0] sm:$0xff]
    %v320 = vld [vmem:[#allocation7 + $0xe8] sm:$0xff]
    %v321 = vld [vmem:[#allocation7 + $0xf0] sm:$0xff]
    %v322 = vld [vmem:[#allocation7 + $0xf8] sm:$0xff]
    %v323 = vld [vmem:[#allocation7 + $0x100] sm:$0xff]
    %v324 = vld [vmem:[#allocation7 + $0x108] sm:$0xff]
    %v325 = vld [vmem:[#allocation7 + $0x110] sm:$0xff]
    %v326 = vld [vmem:[#allocation7 + $0x118] sm:$0xff]
    %v327 = vld [vmem:[#allocation7 + $0x120] sm:$0xff]
    %v328 = vld [vmem:[#allocation7 + $0x128] sm:$0xff]
    %v329 = vld [vmem:[#allocation7 + $0x130] sm:$0xff]
    %v330 = vld [vmem:[#allocation7 + $0x138] sm:$0xff]
    %v331 = vld [vmem:[#allocation7 + $0x140] sm:$0xff]
    %v332 = vld [vmem:[#allocation7 + $0x148] sm:$0xff]
    %v333 = vld [vmem:[#allocation7 + $0x150] sm:$0xff]
    %v334 = vld [vmem:[#allocation7 + $0x158] sm:$0xff]
    %v335 = vld [vmem:[#allocation7 + $0x160] sm:$0xff]
    %v336 = vld [vmem:[#allocation7 + $0x168] sm:$0xff]
    %v337 = vld [vmem:[#allocation7 + $0x170] sm:$0xff]
    %v338 = vld [vmem:[#allocation7 + $0x178] sm:$0xff]
    %v339 = vld [vmem:[#allocation7 + $0x180] sm:$0xff]
    %v340 = vld [vmem:[#allocation7 + $0x188] sm:$0xff]
    %v341 = vld [vmem:[#allocation7 + $0x190] sm:$0xff]
    %v342 = vld [vmem:[#allocation7 + $0x198] sm:$0xff]
    %v343 = vld [vmem:[#allocation7 + $0x1a0] sm:$0xff]
    %v344 = vld [vmem:[#allocation7 + $0x1a8] sm:$0xff]
    %v345 = vld [vmem:[#allocation7 + $0x1b0] sm:$0xff]
    %v346 = vld [vmem:[#allocation7 + $0x1b8] sm:$0xff]
    %v347 = vld [vmem:[#allocation7 + $0x1c0] sm:$0xff]
    %v348 = vld [vmem:[#allocation7 + $0x1c8] sm:$0xff]
    %v349 = vld [vmem:[#allocation7 + $0x1d0] sm:$0xff]
    %v350 = vld [vmem:[#allocation7 + $0x1d8] sm:$0xff]
    %v351 = vld [vmem:[#allocation7 + $0x1e0] sm:$0xff]
    %v352 = vld [vmem:[#allocation7 + $0x1e8] sm:$0xff]
    %v353 = vld [vmem:[#allocation7 + $0x1f0] sm:$0xff]
    %v354 = vld [vmem:[#allocation7 + $0x1f8] sm:$0xff]
    %v355 = vld [vmem:[#allocation7 + $0x200] sm:$0xff]
    %v356 = vld [vmem:[#allocation7 + $0x208] sm:$0xff]
    %v357 = vld [vmem:[#allocation7 + $0x210] sm:$0xff]
    %v358 = vld [vmem:[#allocation7 + $0x218] sm:$0xff]
    %v359 = vld [vmem:[#allocation7 + $0x220] sm:$0xff]
    %v360 = vld [vmem:[#allocation7 + $0x228] sm:$0xff]
    %v361 = vld [vmem:[#allocation7 + $0x230] sm:$0xff]
    %v362 = vld [vmem:[#allocation7 + $0x238] sm:$0xff]
    %v363 = vld [vmem:[#allocation7 + $0x240] sm:$0xff]
    %v364 = vld [vmem:[#allocation7 + $0x248] sm:$0xff]
    %v365 = vld [vmem:[#allocation7 + $0x250] sm:$0xff]
    %v366 = vld [vmem:[#allocation7 + $0x258] sm:$0xff]
    %v367 = vld [vmem:[#allocation7 + $0x260] sm:$0xff]
    %v368 = vld [vmem:[#allocation7 + $0x268] sm:$0xff]
    %v369 = vld [vmem:[#allocation7 + $0x270] sm:$0xff]
    %v370 = vld [vmem:[#allocation7 + $0x278] sm:$0xff]
    %v371 = vld [vmem:[#allocation7 + $0x280] sm:$0xff]
    %v372 = vld [vmem:[#allocation7 + $0x288] sm:$0xff]
    %v373 = vld [vmem:[#allocation7 + $0x290] sm:$0xff]
    %v374 = vld [vmem:[#allocation7 + $0x298] sm:$0xff]
    %v375 = vld [vmem:[#allocation7 + $0x2a0] sm:$0xff]
    %v376 = vld [vmem:[#allocation7 + $0x2a8] sm:$0xff]
    %v377 = vld [vmem:[#allocation7 + $0x2b0] sm:$0xff]
    %v378 = vld [vmem:[#allocation7 + $0x2b8] sm:$0xff]
    %v379 = vld [vmem:[#allocation7 + $0x2c0] sm:$0xff]
    %v380 = vld [vmem:[#allocation7 + $0x2c8] sm:$0xff]
    %v381 = vld [vmem:[#allocation7 + $0x2d0] sm:$0xff]
    %v382 = vld [vmem:[#allocation7 + $0x2d8] sm:$0xff]
    %v383 = vld [vmem:[#allocation7 + $0x2e0] sm:$0xff]
    %v384 = vld [vmem:[#allocation7 + $0x2e8] sm:$0xff]
    %v385 = vld [vmem:[#allocation7 + $0x2f0] sm:$0xff]
    %v386 = vld [vmem:[#allocation7 + $0x2f8] sm:$0xff]
    %v387 = vld [vmem:[#allocation7 + $0x300] sm:$0xff]
    %v388 = vld [vmem:[#allocation7 + $0x308] sm:$0xff]
    %v389 = vld [vmem:[#allocation7 + $0x310] sm:$0xff]
    %v390 = vld [vmem:[#allocation7 + $0x318] sm:$0xff]
    %v391 = vld [vmem:[#allocation7 + $0x320] sm:$0xff]
    %v392 = vld [vmem:[#allocation7 + $0x328] sm:$0xff]
    %v393 = vld [vmem:[#allocation7 + $0x330] sm:$0xff]
    %v394 = vld [vmem:[#allocation7 + $0x338] sm:$0xff]
    %v395 = vld [vmem:[#allocation7 + $0x340] sm:$0xff]
    %v396 = vld [vmem:[#allocation7 + $0x348] sm:$0xff]
    %v397 = vld [vmem:[#allocation7 + $0x350] sm:$0xff]
    %v398 = vld [vmem:[#allocation7 + $0x358] sm:$0xff]
    %v399 = vld [vmem:[#allocation7 + $0x360] sm:$0xff]
    %v400 = vld [vmem:[#allocation7 + $0x368] sm:$0xff]
    %v401 = vld [vmem:[#allocation7 + $0x370] sm:$0xff]
    %v402 = vld [vmem:[#allocation7 + $0x378] sm:$0xff]
    %v403 = vld [vmem:[#allocation7 + $0x380] sm:$0xff]
    %v404 = vld [vmem:[#allocation7 + $0x388] sm:$0xff]
    %v405 = vld [vmem:[#allocation7 + $0x390] sm:$0xff]
    %v406 = vld [vmem:[#allocation7 + $0x398] sm:$0xff]
    %v407 = vld [vmem:[#allocation7 + $0x3a0] sm:$0xff]
    %v408 = vld [vmem:[#allocation7 + $0x3a8] sm:$0xff]
    %v409 = vld [vmem:[#allocation7 + $0x3b0] sm:$0xff]
    %v410 = vld [vmem:[#allocation7 + $0x3b8] sm:$0xff]
    %v411 = vld [vmem:[#allocation7 + $0x3c0] sm:$0xff]
    %v412 = vld [vmem:[#allocation7 + $0x3c8] sm:$0xff]
    %v413 = vld [vmem:[#allocation7 + $0x3d0] sm:$0xff]
    %v414 = vld [vmem:[#allocation7 + $0x3d8] sm:$0xff]
    %v415 = vld [vmem:[#allocation7 + $0x3e0] sm:$0xff]
    %v416 = vld [vmem:[#allocation7 + $0x3e8] sm:$0xff]
    %v417 = vld [vmem:[#allocation7 + $0x3f0] sm:$0xff]
    %v418 = vld [vmem:[#allocation7 + $0x3f8] sm:$0xff]
    %v419 = vld [vmem:[%s4] sm:$0x3]
    %v421 = vlaneseq
    %v422 = vshrl.u32 %v421, 7
    %v423 = vsub.s32 0, %v422
    %v424 = vrot.slane %v419, %v423
    %v425 = vlaneseq
    %v426 = vshrl.u32 %v425, 7
    %v427 = vsub.s32 1, %v426
    %v428 = vrot.slane %v419, %v427
    %431 = vmatprep.subr.mxu0 %v292
    %432 = vmatpush1.msra.mxu0 %v291
    %433 = vmatprep.subr.mxu0 %v294
    %434 = vmatpush1.msra.mxu0 %v293
    %435 = vmatprep.subr.mxu0 %v296
    %436 = vmatpush1.msra.mxu0 %v295
    %437 = vmatprep.subr.mxu0 %v298
    %438 = vmatpush1.msra.mxu0 %v297
    %439 = vmatprep.subr.mxu0 %v300
    %440 = vmatpush1.msra.mxu0 %v299
    %441 = vmatprep.subr.mxu0 %v302
    %442 = vmatpush1.msra.mxu0 %v301
    %443 = vmatprep.subr.mxu0 %v304
    %444 = vmatpush1.msra.mxu0 %v303
    %445 = vmatprep.subr.mxu0 %v306
    %446 = vmatpush1.msra.mxu0 %v305
    %447 = vmatprep.subr.mxu0 %v308
    %448 = vmatpush1.msra.mxu0 %v307
    %449 = vmatprep.subr.mxu0 %v310
    %450 = vmatpush1.msra.mxu0 %v309
    %451 = vmatprep.subr.mxu0 %v312
    %452 = vmatpush1.msra.mxu0 %v311
    %453 = vmatprep.subr.mxu0 %v314
    %454 = vmatpush1.msra.mxu0 %v313
    %455 = vmatprep.subr.mxu0 %v316
    %456 = vmatpush1.msra.mxu0 %v315
    %457 = vmatprep.subr.mxu0 %v318
    %458 = vmatpush1.msra.mxu0 %v317
    %459 = vmatprep.subr.mxu0 %v320
    %460 = vmatpush1.msra.mxu0 %v319
    %461 = vmatprep.subr.mxu0 %v322
    %462 = vmatpush1.msra.mxu0 %v321
    %463 = vmatprep.subr.mxu0 %v324
    %464 = vmatpush1.msra.mxu0 %v323
    %465 = vmatprep.subr.mxu0 %v326
    %466 = vmatpush1.msra.mxu0 %v325
    %467 = vmatprep.subr.mxu0 %v328
    %468 = vmatpush1.msra.mxu0 %v327
    %469 = vmatprep.subr.mxu0 %v330
    %470 = vmatpush1.msra.mxu0 %v329
    %471 = vmatprep.subr.mxu0 %v332
    %472 = vmatpush1.msra.mxu0 %v331
    %473 = vmatprep.subr.mxu0 %v334
    %474 = vmatpush1.msra.mxu0 %v333
    %475 = vmatprep.subr.mxu0 %v336
    %476 = vmatpush1.msra.mxu0 %v335
    %477 = vmatprep.subr.mxu0 %v338
    %478 = vmatpush1.msra.mxu0 %v337
    %479 = vmatprep.subr.mxu0 %v340
    %480 = vmatpush1.msra.mxu0 %v339
    %481 = vmatprep.subr.mxu0 %v342
    %482 = vmatpush1.msra.mxu0 %v341
    %483 = vmatprep.subr.mxu0 %v344
    %484 = vmatpush1.msra.mxu0 %v343
    %485 = vmatprep.subr.mxu0 %v346
    %486 = vmatpush1.msra.mxu0 %v345
    %487 = vmatprep.subr.mxu0 %v348
    %488 = vmatpush1.msra.mxu0 %v347
    %489 = vmatprep.subr.mxu0 %v350
    %490 = vmatpush1.msra.mxu0 %v349
    %491 = vmatprep.subr.mxu0 %v352
    %492 = vmatpush1.msra.mxu0 %v351
    %493 = vmatprep.subr.mxu0 %v354
    %494 = vmatpush1.msra.mxu0 %v353
    %495 = vmatprep.mubr.f32.mxu0 %v284
    %496 = vmatmul.mubr.f32.gmra.mrb[0].mxu0 %v283
    %v497 = vpop.f32.mrb[0].mxu0
    %v498 = vadd.f32 %v424, %v497
    %v499 = vpop.f32.mrb[0].mxu0
    %v500 = vadd.f32 %v428, %v499
    %501 = vmatprep.mubr.f32.mxu0 %v288
    %502 = vmatmul.mubr.f32.gmra.mrb[0].mxu0 %v287
    %v503 = vpop.f32.mrb[0].mxu0
    %v504 = vadd.f32 %v424, %v503
    %v505 = vpop.f32.mrb[0].mxu0
    %v506 = vadd.f32 %v428, %v505
    %507 = vdwg.mxu0
    %508 = vmatprep.subr.mxu0 %v356
    %509 = vmatpush1.msra.mxu0 %v355
    %510 = vmatprep.subr.mxu0 %v358
    %511 = vmatpush1.msra.mxu0 %v357
    %512 = vmatprep.subr.mxu0 %v360
    %513 = vmatpush1.msra.mxu0 %v359
    %514 = vmatprep.subr.mxu0 %v362
    %515 = vmatpush1.msra.mxu0 %v361
    %516 = vmatprep.subr.mxu0 %v364
    %517 = vmatpush1.msra.mxu0 %v363
    %518 = vmatprep.subr.mxu0 %v366
    %519 = vmatpush1.msra.mxu0 %v365
    %520 = vmatprep.subr.mxu0 %v368
    %521 = vmatpush1.msra.mxu0 %v367
    %522 = vmatprep.subr.mxu0 %v370
    %523 = vmatpush1.msra.mxu0 %v369
    %524 = vmatprep.subr.mxu0 %v372
    %525 = vmatpush1.msra.mxu0 %v371
    %526 = vmatprep.subr.mxu0 %v374
    %527 = vmatpush1.msra.mxu0 %v373
    %528 = vmatprep.subr.mxu0 %v376
    %529 = vmatpush1.msra.mxu0 %v375
    %530 = vmatprep.subr.mxu0 %v378
    %531 = vmatpush1.msra.mxu0 %v377
    %532 = vmatprep.subr.mxu0 %v380
    %533 = vmatpush1.msra.mxu0 %v379
    %534 = vmatprep.subr.mxu0 %v382
    %535 = vmatpush1.msra.mxu0 %v381
    %536 = vmatprep.subr.mxu0 %v384
    %537 = vmatpush1.msra.mxu0 %v383
    %538 = vmatprep.subr.mxu0 %v386
    %539 = vmatpush1.msra.mxu0 %v385
    %540 = vmatprep.subr.mxu0 %v388
    %541 = vmatpush1.msra.mxu0 %v387
    %542 = vmatprep.subr.mxu0 %v390
    %543 = vmatpush1.msra.mxu0 %v389
    %544 = vmatprep.subr.mxu0 %v392
    %545 = vmatpush1.msra.mxu0 %v391
    %546 = vmatprep.subr.mxu0 %v394
    %547 = vmatpush1.msra.mxu0 %v393
    %548 = vmatprep.subr.mxu0 %v396
    %549 = vmatpush1.msra.mxu0 %v395
    %550 = vmatprep.subr.mxu0 %v398
    %551 = vmatpush1.msra.mxu0 %v397
    %552 = vmatprep.subr.mxu0 %v400
    %553 = vmatpush1.msra.mxu0 %v399
    %554 = vmatprep.subr.mxu0 %v402
    %555 = vmatpush1.msra.mxu0 %v401
    %556 = vmatprep.subr.mxu0 %v404
    %557 = vmatpush1.msra.mxu0 %v403
    %558 = vmatprep.subr.mxu0 %v406
    %559 = vmatpush1.msra.mxu0 %v405
    %560 = vmatprep.subr.mxu0 %v408
    %561 = vmatpush1.msra.mxu0 %v407
    %562 = vmatprep.subr.mxu0 %v410
    %563 = vmatpush1.msra.mxu0 %v409
    %564 = vmatprep.subr.mxu0 %v412
    %565 = vmatpush1.msra.mxu0 %v411
    %566 = vmatprep.subr.mxu0 %v414
    %567 = vmatpush1.msra.mxu0 %v413
    %568 = vmatprep.subr.mxu0 %v416
    %569 = vmatpush1.msra.mxu0 %v415
    %570 = vmatprep.subr.mxu0 %v418
    %571 = vmatpush1.msra.mxu0 %v417
    %572 = vmatprep.mubr.f32.mxu0 %v286
    %573 = vmatmul.mubr.f32.gmra.mrb[0].mxu0 %v285
    %v574 = vpop.f32.mrb[0].mxu0
    %v575 = vadd.f32 %v498, %v574
    %v576 = vpop.f32.mrb[0].mxu0
    %v577 = vadd.f32 %v500, %v576
    %578 = vmatprep.mubr.f32.mxu0 %v290
    %579 = vmatmul.mubr.f32.gmra.mrb[0].mxu0 %v289
    %v580 = vpop.f32.mrb[0].mxu0
    %v581 = vadd.f32 %v504, %v580
    %v582 = vpop.f32.mrb[0].mxu0
    %v583 = vadd.f32 %v506, %v582
    %584 = vdwg.mxu0
    %v585 = vld [vmem:[#allocation8] sm:$0xff]
    %v586 = vld [vmem:[#allocation8 + $0x8] sm:$0xff]
    %v587 = vld [vmem:[#allocation8 + $0x10] sm:$0xff]
    %v588 = vld [vmem:[#allocation8 + $0x18] sm:$0xff]
    %v589 = vld [vmem:[#allocation8 + $0x20] sm:$0xff]
    %v590 = vld [vmem:[#allocation8 + $0x28] sm:$0xff]
    %v591 = vld [vmem:[#allocation8 + $0x30] sm:$0xff]
    %v592 = vld [vmem:[#allocation8 + $0x38] sm:$0xff]
    %v593 = vld [vmem:[#allocation8 + $0x40] sm:$0xff]
    %v594 = vld [vmem:[#allocation8 + $0x48] sm:$0xff]
    %v595 = vld [vmem:[#allocation8 + $0x50] sm:$0xff]
    %v596 = vld [vmem:[#allocation8 + $0x58] sm:$0xff]
    %v597 = vld [vmem:[#allocation8 + $0x60] sm:$0xff]
    %v598 = vld [vmem:[#allocation8 + $0x68] sm:$0xff]
    %v599 = vld [vmem:[#allocation8 + $0x70] sm:$0xff]
    %v600 = vld [vmem:[#allocation8 + $0x78] sm:$0xff]
    %v601 = vld [vmem:[#allocation8 + $0x80] sm:$0xff]
    %v602 = vld [vmem:[#allocation8 + $0x88] sm:$0xff]
    %v603 = vld [vmem:[#allocation8 + $0x90] sm:$0xff]
    %v604 = vld [vmem:[#allocation8 + $0x98] sm:$0xff]
    %v605 = vld [vmem:[#allocation8 + $0xa0] sm:$0xff]
    %v606 = vld [vmem:[#allocation8 + $0xa8] sm:$0xff]
    %v607 = vld [vmem:[#allocation8 + $0xb0] sm:$0xff]
    %v608 = vld [vmem:[#allocation8 + $0xb8] sm:$0xff]
    %v609 = vld [vmem:[#allocation8 + $0xc0] sm:$0xff]
    %v610 = vld [vmem:[#allocation8 + $0xc8] sm:$0xff]
    %v611 = vld [vmem:[#allocation8 + $0xd0] sm:$0xff]
    %v612 = vld [vmem:[#allocation8 + $0xd8] sm:$0xff]
    %v613 = vld [vmem:[#allocation8 + $0xe0] sm:$0xff]
    %v614 = vld [vmem:[#allocation8 + $0xe8] sm:$0xff]
    %v615 = vld [vmem:[#allocation8 + $0xf0] sm:$0xff]
    %v616 = vld [vmem:[#allocation8 + $0xf8] sm:$0xff]
    %v617 = vld [vmem:[%s6] sm:$0x1]
    %v619 = vlaneseq
    %v620 = vshrl.u32 %v619, 7
    %v621 = vsub.s32 0, %v620
    %v622 = vrot.slane %v617, %v621
    %624 = vmatprep.subr.mxu0 0.0
    %625 = vmatpush1.msra.mxu0 %v585
    %626 = vmatprep.subr.mxu0 0.0
    %627 = vmatpush1.msra.mxu0 %v586
    %628 = vmatprep.subr.mxu0 0.0
    %629 = vmatpush1.msra.mxu0 %v587
    %630 = vmatprep.subr.mxu0 0.0
    %631 = vmatpush1.msra.mxu0 %v588
    %632 = vmatprep.subr.mxu0 0.0
    %633 = vmatpush1.msra.mxu0 %v589
    %634 = vmatprep.subr.mxu0 0.0
    %635 = vmatpush1.msra.mxu0 %v590
    %636 = vmatprep.subr.mxu0 0.0
    %637 = vmatpush1.msra.mxu0 %v591
    %638 = vmatprep.subr.mxu0 0.0
    %639 = vmatpush1.msra.mxu0 %v592
    %640 = vmatprep.subr.mxu0 0.0
    %641 = vmatpush1.msra.mxu0 %v593
    %642 = vmatprep.subr.mxu0 0.0
    %643 = vmatpush1.msra.mxu0 %v594
    %644 = vmatprep.subr.mxu0 0.0
    %645 = vmatpush1.msra.mxu0 %v595
    %646 = vmatprep.subr.mxu0 0.0
    %647 = vmatpush1.msra.mxu0 %v596
    %648 = vmatprep.subr.mxu0 0.0
    %649 = vmatpush1.msra.mxu0 %v597
    %650 = vmatprep.subr.mxu0 0.0
    %651 = vmatpush1.msra.mxu0 %v598
    %652 = vmatprep.subr.mxu0 0.0
    %653 = vmatpush1.msra.mxu0 %v599
    %654 = vmatprep.subr.mxu0 0.0
    %655 = vmatpush1.msra.mxu0 %v600
    %656 = vmatprep.subr.mxu0 0.0
    %657 = vmatpush1.msra.mxu0 %v601
    %658 = vmatprep.subr.mxu0 0.0
    %659 = vmatpush1.msra.mxu0 %v602
    %660 = vmatprep.subr.mxu0 0.0
    %661 = vmatpush1.msra.mxu0 %v603
    %662 = vmatprep.subr.mxu0 0.0
    %663 = vmatpush1.msra.mxu0 %v604
    %664 = vmatprep.subr.mxu0 0.0
    %665 = vmatpush1.msra.mxu0 %v605
    %666 = vmatprep.subr.mxu0 0.0
    %667 = vmatpush1.msra.mxu0 %v606
    %668 = vmatprep.subr.mxu0 0.0
    %669 = vmatpush1.msra.mxu0 %v607
    %670 = vmatprep.subr.mxu0 0.0
    %671 = vmatpush1.msra.mxu0 %v608
    %672 = vmatprep.subr.mxu0 0.0
    %673 = vmatpush1.msra.mxu0 %v609
    %674 = vmatprep.subr.mxu0 0.0
    %675 = vmatpush1.msra.mxu0 %v610
    %676 = vmatprep.subr.mxu0 0.0
    %677 = vmatpush1.msra.mxu0 %v611
    %678 = vmatprep.subr.mxu0 0.0
    %679 = vmatpush1.msra.mxu0 %v612
    %680 = vmatprep.subr.mxu0 0.0
    %681 = vmatpush1.msra.mxu0 %v613
    %682 = vmatprep.subr.mxu0 0.0
    %683 = vmatpush1.msra.mxu0 %v614
    %684 = vmatprep.subr.mxu0 0.0
    %685 = vmatpush1.msra.mxu0 %v615
    %686 = vmatprep.subr.mxu0 0.0
    %687 = vmatpush1.msra.mxu0 %v616
    %688 = vmatprep.mubr.f32.mxu0 %v577
    %689 = vmatmul.mubr.f32.gmra.mrb[0].mxu0 %v575
    %v690 = vpop.f32.mrb[0].mxu0
    %v691 = vadd.f32 %v622, %v690
    %v692 = vpop.f32.mrb[0].mxu0
    %693 = vmatprep.mubr.f32.mxu0 %v583
    %694 = vmatmul.mubr.f32.gmra.mrb[0].mxu0 %v581
    %v695 = vpop.f32.mrb[0].mxu0
    %v696 = vadd.f32 %v622, %v695
    %v697 = vpop.f32.mrb[0].mxu0
    %698 = vdwg.mxu0
    %699 = vst [vmem:[#allocation10] sm:$0xff] %v691
    %700 = vst [vmem:[#allocation10 + $0x8] sm:$0xff] %v696
    // Predicated region
    $region46: #{tpu_custom_call.1} parent=1 // pred_check
      _
    $region47: #{tpu_custom_call.1} parent=1 // pred_check_branch
      %702 = sbr.rel (0) target = $region49
    $region48: #{tpu_custom_call.1} parent=1 // pred_region
      %s704 = ssub.s32 256, 256
      %705 = vsyncadd [#allocation4], %s704
      %s706 = sshll.u32 [#allocation10], 4
      %s707 = int_to_ptr.vmem [resolvable:$true] %s706
      %712 = dma.vmem_to_hbm [thread:$0]  %s707, 256, %s7, [#allocation4], 128, 128, 8
    $region49: #{tpu_custom_call.1} parent=1 // pred_fallthru
      _
    // Predicated region
    $region50: #{tpu_custom_call.1} parent=1 // pred_check
      _
    $region51: #{tpu_custom_call.1} parent=1 // pred_check_branch
      %714 = sbr.rel (0) target = $region53
    $region52: #{tpu_custom_call.1} parent=1 // pred_region
      %715 = dma.done [#allocation4], 256
    $region53: #{tpu_custom_call.1} parent=1 // pred_fallthru
      _
    %716 = vsyncpa [#allocation3], 1
    %717 = vsyncpa [#allocation6], 1
    %718 = vsyncpa [#allocation9], 1
    %719 = vsyncpa [#allocation4], 1

</llo_original>
